<compile_context>
chip_gen: v7x
topology: tpu7x:2x2x1
jax: 0.10.0
libtpu: 0.0.40
codegen_flags: <defaults>
</compile_context>

<pallas_src>
import functools

import jax
import jax.numpy as jnp
from jax.experimental import pallas as pl
from jax.experimental.pallas import tpu as pltpu


def _segmap_kernel(lhs_ref, seg_ref, gamma_ref, beta_ref, *, C, fused_lhs):
    # lhs_ref : (R, I)  stacked LHS rows; R = 2C (fused) or 6C (general)
    # seg_ref : (I, T)  segmentation-map tile (labels x spatial lanes)
    # out refs: (C, T)
    seg = seg_ref[...].astype(jnp.float32)
    proj = jnp.dot(lhs_ref[...], seg, preferred_element_type=jnp.float32)
    if fused_lhs:
        # rows: [gamma (C) | beta (C)]
        gamma_ref[...] = proj[0:C].astype(gamma_ref.dtype)
        beta_ref[...] = proj[C:2 * C].astype(beta_ref.dtype)
    else:
        # rows: [w0 | b0 | nf0 | w1 | b1 | nf1], each C rows
        w0, b0, nf0 = proj[0:C], proj[C:2 * C], proj[2 * C:3 * C]
        w1, b1, nf1 = proj[3 * C:4 * C], proj[4 * C:5 * C], proj[5 * C:6 * C]
        gamma_ref[...] = (w0 * nf0 + b0).astype(gamma_ref.dtype)
        beta_ref[...] = (w1 * nf1 + b1).astype(beta_ref.dtype)


@functools.partial(
    jax.jit,
    static_argnames=("tile_hw", "cast_seg_bf16", "assume_one_hot"))
def segmap_encoder_forward(segmentation_map, noise, params,
                           tile_hw=None, cast_seg_bf16=True,
                           assume_one_hot=False):
    """Forward pass of SegMapEncoder.

    segmentation_map: (N, I, H, W) float32
    noise           : (N, I, 2, D) float32
    params: dict with
        'weight'   : (I, C, 2)
        'bias'     : (I, C, 2)
        'fc_weight': (C, D)   (PyTorch nn.Linear weight layout)
        'fc_bias'  : (C,)
    Returns (gamma, beta), each (N, C, H, W) float32.

    cast_seg_bf16: read the seg map as bf16 (exact for one-hot 0/1 maps;
                   ~bf16 rounding of the map itself for soft maps).
    assume_one_hot: algebraic fusion valid ONLY for strictly one-hot maps.
    """
    N, I, H, W = segmentation_map.shape
    C = params["weight"].shape[1]
    HW = H * W

    # ---- glue: fc_noise + stacked-LHS construction (tiny) in plain JAX ----
    noise_fc = (jnp.einsum("nikd,cd->nikc", noise, params["fc_weight"])
                + params["fc_bias"])                       # (N, I, 2, C)
    nfT = jnp.transpose(noise_fc, (0, 2, 3, 1))            # (N, 2, C, I)
    wT = jnp.transpose(params["weight"], (2, 1, 0))        # (2, C, I)
    bT = jnp.transpose(params["bias"], (2, 1, 0))          # (2, C, I)

    if assume_one_hot:
        # (w.s)*(nf.s) + (b.s) == ((w*nf)+b).s  for one-hot s
        lhs = (wT[None] * nfT + bT[None]).reshape(N, 2 * C, I)       # (N, 2C, I)
    else:
        wb = jnp.stack([wT, bT], axis=1)                             # (2, 2, C, I)
        wb = jnp.broadcast_to(wb[None], (N, 2, 2, C, I))
        lhs = jnp.concatenate([wb, nfT[:, :, None]], axis=2)         # (N, 2, 3, C, I)
        lhs = lhs.reshape(N, 6 * C, I)                               # (N, 6C, I)
    R = lhs.shape[1]

    seg_flat = segmentation_map.reshape(N, I, HW)
    if cast_seg_bf16:
        seg_flat = seg_flat.astype(jnp.bfloat16)

    # ---- tile selection: big lane-dense tiles, multiple of 128 ----
    if tile_hw is None:
        tile_hw = min(8192, pl.cdiv(HW, 128) * 128)
    assert tile_hw % 128 == 0, "tile_hw must be a multiple of 128"
    num_tiles = pl.cdiv(HW, tile_hw)
    HW_pad = num_tiles * tile_hw
    if HW_pad != HW:
        # zero-pad the tail tile; padded columns produce zeros and are sliced off
        seg_flat = jnp.pad(seg_flat, ((0, 0), (0, 0), (0, HW_pad - HW)))

    # ---- explicit VMEM budget (double-buffered footprint + margin) ----
    seg_bytes = I * tile_hw * seg_flat.dtype.itemsize
    out_bytes = C * tile_hw * 4
    lhs_bytes = R * I * 4
    est_vmem = 2 * (seg_bytes + 2 * out_bytes + lhs_bytes) + (1 << 20)
    # cap below v7x's 64 MiB physical VMEM with headroom
    vmem_limit = int(min(max(est_vmem, 16 * 1024 * 1024), 48 * 1024 * 1024))

    kernel = functools.partial(_segmap_kernel, C=C, fused_lhs=assume_one_hot)

    out_shape = (jax.ShapeDtypeStruct((N, C, HW_pad), jnp.float32),
                 jax.ShapeDtypeStruct((N, C, HW_pad), jnp.float32))

    gamma_flat, beta_flat = pl.pallas_call(
        kernel,
        out_shape=out_shape,
        grid_spec=pltpu.PrefetchScalarGridSpec(
            num_scalar_prefetch=0,
            grid=(N, num_tiles),
            in_specs=[
                pl.BlockSpec((None, R, I), lambda n, t: (n, 0, 0)),        # lhs
                pl.BlockSpec((None, I, tile_hw), lambda n, t: (n, 0, t)),  # seg
            ],
            out_specs=[
                pl.BlockSpec((None, C, tile_hw), lambda n, t: (n, 0, t)),  # gamma
                pl.BlockSpec((None, C, tile_hw), lambda n, t: (n, 0, t)),  # beta
            ],
        ),
        compiler_params=pltpu.CompilerParams(
            dimension_semantics=("parallel", "parallel"),
            vmem_limit_bytes=vmem_limit),
    )(lhs, seg_flat)

    if HW_pad != HW:
        gamma_flat = gamma_flat[:, :, :HW]
        beta_flat = beta_flat[:, :, :HW]
    gamma = gamma_flat.reshape(N, C, H, W)
    beta = beta_flat.reshape(N, C, H, W)
    return gamma, beta


def _reference_forward(segmentation_map, noise, params):
    """Pure-JAX reference mirroring the PyTorch forward."""
    noise_fc = (jnp.einsum("nikd,cd->nikc", noise, params["fc_weight"])
                + params["fc_bias"])
    w, b = params["weight"], params["bias"]
    outs = []
    for k in range(2):
        cw = jnp.einsum("ic,nihw->nchw", w[..., k], segmentation_map)
        cb = jnp.einsum("ic,nihw->nchw", b[..., k], segmentation_map)
        inst = jnp.einsum("nic,nihw->nchw", noise_fc[:, :, k, :],
                          segmentation_map)
        outs.append(cw * inst + cb)
    return tuple(outs)


def init_params(key, num_labels, out_channels, noise_dim):
    k_w, k_fcw, k_fcb = jax.random.split(key, 3)
    # nn.init.uniform_(self.weight) -> U[0, 1)
    weight = jax.random.uniform(k_w, (num_labels, out_channels, 2),
                                dtype=jnp.float32)
    bias = jnp.zeros((num_labels, out_channels, 2), jnp.float32)
    # nn.Linear default init (uniform in +/- 1/sqrt(fan_in)), deterministic.
    bound = 1.0 / jnp.sqrt(jnp.float32(noise_dim))
    fc_weight = jax.random.uniform(k_fcw, (out_channels, noise_dim),
                                   minval=-bound, maxval=bound,
                                   dtype=jnp.float32)
    fc_bias = jax.random.uniform(k_fcb, (out_channels,),
                                 minval=-bound, maxval=bound,
                                 dtype=jnp.float32)
    return {"weight": weight, "bias": bias,
            "fc_weight": fc_weight, "fc_bias": fc_bias}


if __name__ == "__main__":
    # Small shapes: batch=2, num_labels=8, out_channels=32, noise_dim=16, 16x16 fmap.
    N, I, C, D, H, W = 2, 8, 32, 16, 16, 16

    key = jax.random.PRNGKey(0)
    k_seg, k_noise, k_params = jax.random.split(key, 3)

    # One-hot segmentation map (hard label per pixel), like a real seg map.
    labels = jax.random.randint(k_seg, (N, H, W), 0, I)
    segmentation_map = jax.nn.one_hot(labels, I, axis=1).astype(jnp.float32)  # (N, I, H, W)
    noise = jax.random.normal(k_noise, (N, I, 2, D), dtype=jnp.float32)

    params = init_params(k_params, I, C, D)

    # General path (exact semantics of the PyTorch module).
    gamma, beta = segmap_encoder_forward(segmentation_map, noise, params)
    jax.block_until_ready((gamma, beta))

    gamma_ref, beta_ref = _reference_forward(segmentation_map, noise, params)
    assert gamma.shape == (N, C, H, W) and beta.shape == (N, C, H, W)
    assert jnp.allclose(gamma, gamma_ref, atol=1e-5, rtol=1e-5)
    assert jnp.allclose(beta, beta_ref, atol=1e-5, rtol=1e-5)

    # One-hot algebraic fast path (valid because this map is strictly one-hot).
    gamma_f, beta_f = segmap_encoder_forward(segmentation_map, noise, params,
                                             assume_one_hot=True)
    jax.block_until_ready((gamma_f, beta_f))
    assert jnp.allclose(gamma_f, gamma_ref, atol=1e-5, rtol=1e-5)
    assert jnp.allclose(beta_f, beta_ref, atol=1e-5, rtol=1e-5)

    # Spatial size not divisible by 128 exercises the cdiv + padding path.
    H2 = W2 = 12
    labels2 = jax.random.randint(k_seg, (N, H2, W2), 0, I)
    seg2 = jax.nn.one_hot(labels2, I, axis=1).astype(jnp.float32)
    gamma2, beta2 = segmap_encoder_forward(seg2, noise, params)
    jax.block_until_ready((gamma2, beta2))
    gamma2_ref, beta2_ref = _reference_forward(seg2, noise, params)
    assert gamma2.shape == (N, C, H2, W2)
    assert jnp.allclose(gamma2, gamma2_ref, atol=1e-5, rtol=1e-5)
    assert jnp.allclose(beta2, beta2_ref, atol=1e-5, rtol=1e-5)

    print("KERNEL_OK")
</pallas_src>

<mosaic_0001>
module attributes {stable_mosaic.version = 11 : i64} {
  func.func @_segmap_kernel(%arg0: i32, %arg1: i32, %arg2: memref<1x192x8xf32, #tpu.memory_space<vmem>>, %arg3: memref<1x8x256xbf16, #tpu.memory_space<vmem>>, %arg4: memref<1x32x256xf32, #tpu.memory_space<vmem>>, %arg5: memref<1x32x256xf32, #tpu.memory_space<vmem>>) attributes {dimension_semantics = [#tpu.dimension_semantics<parallel>, #tpu.dimension_semantics<parallel>], iteration_bounds = array<i64: 2, 1>, scalar_prefetch = 0 : i64, scratch_operands = 0 : i64, tpu.core_type = #tpu.core_type<tc>, window_params = [{transform_indices = @transform_0, window_bounds = array<i64: 1, 192, 8>}, {transform_indices = @transform_1, window_bounds = array<i64: 1, 8, 256>}, {transform_indices = @transform_2, window_bounds = array<i64: 1, 32, 256>}, {transform_indices = @transform_3, window_bounds = array<i64: 1, 32, 256>}]} {
    %c0 = arith.constant 0 : index
    %c0_0 = arith.constant 0 : index
    %c0_1 = arith.constant 0 : index
    %0 = vector.load %arg3[%c0, %c0_0, %c0_1] : memref<1x8x256xbf16, #tpu.memory_space<vmem>>, vector<1x8x256xbf16>
    %1 = vector.shape_cast %0 : vector<1x8x256xbf16> to vector<8x256xbf16>
    %2 = arith.extf %1 : vector<8x256xbf16> to vector<8x256xf32>
    %c0_2 = arith.constant 0 : index
    %c0_3 = arith.constant 0 : index
    %c0_4 = arith.constant 0 : index
    %3 = vector.load %arg2[%c0_2, %c0_3, %c0_4] : memref<1x192x8xf32, #tpu.memory_space<vmem>>, vector<1x192x8xf32>
    %4 = vector.shape_cast %3 : vector<1x192x8xf32> to vector<192x8xf32>
    %cst = arith.constant dense<0.000000e+00> : vector<192x256xf32>
    %5 = tpu.matmul %4, %2, %cst {dimension_numbers = #tpu.dot_dimension_numbers<[1], [0], [0], [1], [0, 0, 1, 1], [], []>} : vector<192x8xf32>, vector<8x256xf32>, vector<192x256xf32> -> vector<192x256xf32>
    %6 = vector.extract_strided_slice %5 {offsets = [0, 0], sizes = [32, 256], strides = [1, 1]} : vector<192x256xf32> to vector<32x256xf32>
    %7 = vector.extract_strided_slice %5 {offsets = [32, 0], sizes = [32, 256], strides = [1, 1]} : vector<192x256xf32> to vector<32x256xf32>
    %8 = vector.extract_strided_slice %5 {offsets = [64, 0], sizes = [32, 256], strides = [1, 1]} : vector<192x256xf32> to vector<32x256xf32>
    %9 = vector.extract_strided_slice %5 {offsets = [96, 0], sizes = [32, 256], strides = [1, 1]} : vector<192x256xf32> to vector<32x256xf32>
    %10 = vector.extract_strided_slice %5 {offsets = [128, 0], sizes = [32, 256], strides = [1, 1]} : vector<192x256xf32> to vector<32x256xf32>
    %11 = vector.extract_strided_slice %5 {offsets = [160, 0], sizes = [32, 256], strides = [1, 1]} : vector<192x256xf32> to vector<32x256xf32>
    %12 = arith.mulf %6, %8 : vector<32x256xf32>
    %13 = arith.addf %12, %7 : vector<32x256xf32>
    %c0_5 = arith.constant 0 : index
    %c0_6 = arith.constant 0 : index
    %c0_7 = arith.constant 0 : index
    %14 = vector.load %arg4[%c0_5, %c0_6, %c0_7] : memref<1x32x256xf32, #tpu.memory_space<vmem>>, vector<1x32x256xf32>
    %15 = vector.shape_cast %14 : vector<1x32x256xf32> to vector<32x256xf32>
    %16 = vector.shape_cast %13 : vector<32x256xf32> to vector<1x32x256xf32>
    tpu.vector_store %arg4[%c0_5, %c0_6, %c0_7], %16 {strides = array<i32>} : memref<1x32x256xf32, #tpu.memory_space<vmem>>, vector<1x32x256xf32>,
    %17 = arith.mulf %9, %11 : vector<32x256xf32>
    %18 = arith.addf %17, %10 : vector<32x256xf32>
    %c0_8 = arith.constant 0 : index
    %c0_9 = arith.constant 0 : index
    %c0_10 = arith.constant 0 : index
    %19 = vector.load %arg5[%c0_8, %c0_9, %c0_10] : memref<1x32x256xf32, #tpu.memory_space<vmem>>, vector<1x32x256xf32>
    %20 = vector.shape_cast %19 : vector<1x32x256xf32> to vector<32x256xf32>
    %21 = vector.shape_cast %18 : vector<32x256xf32> to vector<1x32x256xf32>
    tpu.vector_store %arg5[%c0_8, %c0_9, %c0_10], %21 {strides = array<i32>} : memref<1x32x256xf32, #tpu.memory_space<vmem>>, vector<1x32x256xf32>,
    return
  }
  func.func @transform_0(%arg0: i32, %arg1: i32) -> (i32, i32, i32) {
    %c0_i32 = arith.constant 0 : i32
    %c0_i32_0 = arith.constant 0 : i32
    %c0_i32_1 = arith.constant 0 : i32
    return %arg0, %c0_i32, %c0_i32_0 : i32, i32, i32
  }
  func.func @transform_1(%arg0: i32, %arg1: i32) -> (i32, i32, i32) {
    %c0_i32 = arith.constant 0 : i32
    %c0_i32_0 = arith.constant 0 : i32
    return %arg0, %c0_i32, %arg1 : i32, i32, i32
  }
  func.func @transform_2(%arg0: i32, %arg1: i32) -> (i32, i32, i32) {
    %c0_i32 = arith.constant 0 : i32
    %c0_i32_0 = arith.constant 0 : i32
    return %arg0, %c0_i32, %arg1 : i32, i32, i32
  }
  func.func @transform_3(%arg0: i32, %arg1: i32) -> (i32, i32, i32) {
    %c0_i32 = arith.constant 0 : i32
    %c0_i32_0 = arith.constant 0 : i32
    return %arg0, %c0_i32, %arg1 : i32, i32, i32
  }
}

</mosaic_0001>

<llo_original>
// kernel: segmap_encoder_forward.1
$region0: #{segmap_encoder_forward.1}
  #allocation0 [shape = 'u32[]', space=smem, size = 0x4, offset = 0x4, fixed_abs, tag = 'smem constant byte address 0x4 - core index']
  #allocation1 [shape = 'u32[144,128]{1,0:T(1,128)}', space=vmem, size = 0x12000, scoped, tag = 'internal scratch']
  %s0 = inlined_call_operand.vmem [shape: f32[2,192,8], index: 0, kind: input, shape index: {}]
  %s1 = inlined_call_operand.vmem [shape: bf16[2,8,256], index: 1, kind: input, shape index: {}]
  %s2 = inlined_call_operand.vmem [shape: f32[2,32,256], index: 2, kind: output, shape index: {0}]
  %s3 = inlined_call_operand.vmem [shape: f32[2,32,256], index: 3, kind: output, shape index: {1}]
  %4 = xla_tuple %s2, %s3
  %s5 = sld [smem:[#allocation0]]
  $region49: #{segmap_encoder_forward.1} parent=0
    _
  %s7 = ssub.s32 1, %s5
  %s8 = scalar_select 0, %s7, %s5
  loop: start=0, step=1, limit=4
  $region2: #{segmap_encoder_forward.1} parent=0 // loop_pre_header
    _
  $region3: #{segmap_encoder_forward.1} parent=0 // loop_header
    %s10 = sphi 0, %s14
    %p11 = scmp.ge.s32.totalorder %s10, 4
    %s17 = sphi 0, %s29
    %s18 = sphi 0, %s25
    %s19 = sphi 0, %s17
    %s20 = sphi 0, %s18
    %s21 = sphi 0, %s19
    %s22 = sphi 0, %s20
    %s32 = sphi 0, %s34
    %s35 = sphi 0, %s32
    %s36 = sphi 0, %s35
    %s52 = sphi 0, %s36
    %s60 = sphi 0, %s62
    %s63 = sphi 0, %s60
    %s64 = sphi 0, %s63
    %s80 = sphi 0, %s64
    %s88 = sphi 0, %s90
    %s91 = sphi 0, %s88
    %s92 = sphi 0, %s91
    %s108 = sphi 0, %s92
    %s116 = sphi 0, %s118
    %s119 = sphi 0, %s116
    %s120 = sphi 0, %s119
    %s136 = sphi 0, %s120
  $region4: #{segmap_encoder_forward.1} parent=0 // loop_header_branch
    %13 = sbr.rel (%p11) target = $region8
  $region5: #{segmap_encoder_forward.1} parent=0 // loop_body
    %s15 = ssub.s32 %s10, 1
    %s16 = ssub.s32 %s10, 2
    %s23 = sadd.s32 1, %s18
    %p24 = scmp.ge.s32.totalorder %s23, 1
    %s25 = scalar_select %p24, 0, %s23
    %s26 = sadd.s32 1, %s17
    %s27 = scalar_select %p24, %s26, %s17
    %p28 = scmp.ge.s32.totalorder %s27, 2
    %s29 = scalar_select %p28, 0, %s27
    %s30 = ssub.s32 %s17, %s29
    %p31 = scmp.eq.s32.totalorder %s30, 0
    %s33 = sadd.s32 %s32, 1
    %s34 = scalar_select %p31, %s32, %s33
    %p37 = pneg %p31
    %p38 = scmp.eq.s32.totalorder %s10, 1
    %p39 = por %p37, %p38
    %p40 = scmp.ne.s32.totalorder %s32, %s35
    %p41 = scmp.eq.s32.totalorder %s10, 0
    %p42 = por %p40, %p41
    %p43 = scmp.ne.s32.totalorder %s32, %s35
    %p44 = scmp.eq.s32.totalorder %s15, 1
    %p45 = por %p43, %p44
    %p46 = scmp.ne.s32.totalorder %s35, %s36
    %p47 = scmp.eq.s32.totalorder %s15, 0
    %p48 = por %p46, %p47
    %p49 = scmp.ne.s32.totalorder %s35, %s36
    %p50 = scmp.eq.s32.totalorder %s16, 1
    %p51 = por %p49, %p50
    %p53 = scmp.ne.s32.totalorder %s36, %s52
    %p54 = scmp.eq.s32.totalorder %s16, 0
    %p55 = por %p53, %p54
    %s56 = ssub.s32 %s17, %s29
    %s57 = ssub.s32 %s18, %s25
    %s58 = sor.u32 %s56, %s57
    %p59 = scmp.eq.s32.totalorder %s58, 0
    %s61 = sadd.s32 %s60, 1
    %s62 = scalar_select %p59, %s60, %s61
    %p65 = pneg %p59
    %p66 = scmp.eq.s32.totalorder %s10, 1
    %p67 = por %p65, %p66
    %p68 = scmp.ne.s32.totalorder %s60, %s63
    %p69 = scmp.eq.s32.totalorder %s10, 0
    %p70 = por %p68, %p69
    %p71 = scmp.ne.s32.totalorder %s60, %s63
    %p72 = scmp.eq.s32.totalorder %s15, 1
    %p73 = por %p71, %p72
    %p74 = scmp.ne.s32.totalorder %s63, %s64
    %p75 = scmp.eq.s32.totalorder %s15, 0
    %p76 = por %p74, %p75
    %p77 = scmp.ne.s32.totalorder %s63, %s64
    %p78 = scmp.eq.s32.totalorder %s16, 1
    %p79 = por %p77, %p78
    %p81 = scmp.ne.s32.totalorder %s64, %s80
    %p82 = scmp.eq.s32.totalorder %s16, 0
    %p83 = por %p81, %p82
    %s84 = ssub.s32 %s17, %s29
    %s85 = ssub.s32 %s18, %s25
    %s86 = sor.u32 %s84, %s85
    %p87 = scmp.eq.s32.totalorder %s86, 0
    %s89 = sadd.s32 %s88, 1
    %s90 = scalar_select %p87, %s88, %s89
    %p93 = pneg %p87
    %p94 = scmp.eq.s32.totalorder %s10, 1
    %p95 = por %p93, %p94
    %p96 = scmp.ne.s32.totalorder %s88, %s91
    %p97 = scmp.eq.s32.totalorder %s10, 0
    %p98 = por %p96, %p97
    %p99 = scmp.ne.s32.totalorder %s88, %s91
    %p100 = scmp.eq.s32.totalorder %s15, 1
    %p101 = por %p99, %p100
    %p102 = scmp.ne.s32.totalorder %s91, %s92
    %p103 = scmp.eq.s32.totalorder %s15, 0
    %p104 = por %p102, %p103
    %p105 = scmp.ne.s32.totalorder %s91, %s92
    %p106 = scmp.eq.s32.totalorder %s16, 1
    %p107 = por %p105, %p106
    %p109 = scmp.ne.s32.totalorder %s92, %s108
    %p110 = scmp.eq.s32.totalorder %s16, 0
    %p111 = por %p109, %p110
    %s112 = ssub.s32 %s17, %s29
    %s113 = ssub.s32 %s18, %s25
    %s114 = sor.u32 %s112, %s113
    %p115 = scmp.eq.s32.totalorder %s114, 0
    %s117 = sadd.s32 %s116, 1
    %s118 = scalar_select %p115, %s116, %s117
    %p121 = pneg %p115
    %p122 = scmp.eq.s32.totalorder %s10, 1
    %p123 = por %p121, %p122
    %p124 = scmp.ne.s32.totalorder %s116, %s119
    %p125 = scmp.eq.s32.totalorder %s10, 0
    %p126 = por %p124, %p125
    %p127 = scmp.ne.s32.totalorder %s116, %s119
    %p128 = scmp.eq.s32.totalorder %s15, 1
    %p129 = por %p127, %p128
    %p130 = scmp.ne.s32.totalorder %s119, %s120
    %p131 = scmp.eq.s32.totalorder %s15, 0
    %p132 = por %p130, %p131
    %p133 = scmp.ne.s32.totalorder %s119, %s120
    %p134 = scmp.eq.s32.totalorder %s16, 1
    %p135 = por %p133, %p134
    %p137 = scmp.ne.s32.totalorder %s120, %s136
    %p138 = scmp.eq.s32.totalorder %s16, 0
    %p139 = por %p137, %p138
    %p140 = scmp.le.s32.totalorder 1, %s10
    %p141 = scmp.lt.s32.totalorder %s10, 3
    %p142 = pnand %p140, %p141
    %p143 = pneg %p142
    // Predicated region
    $region9: #{segmap_encoder_forward.1} parent=5 // pred_check
      _
    $region10: #{segmap_encoder_forward.1} parent=5 // pred_check_branch
      %145 = sbr.rel (%p142) target = $region12
    $region11: #{segmap_encoder_forward.1} parent=5 // pred_region
      %s146 = ssub.s32 %s10, 1
    $region12: #{segmap_encoder_forward.1} parent=5 // pred_fallthru
      _
    %p147 = scmp.lt.s32.totalorder %s10, 2
    // Predicated region
    $region13: #{segmap_encoder_forward.1} parent=5 // pred_check
      %p148 = pneg %p147
    $region14: #{segmap_encoder_forward.1} parent=5 // pred_check_branch
      %150 = sbr.rel (%p148) target = $region16
    $region15: #{segmap_encoder_forward.1} parent=5 // pred_region
      // Predicated region
      $region17: #{segmap_encoder_forward.1} parent=15 // pred_check
        %p151 = pneg %p42
      $region18: #{segmap_encoder_forward.1} parent=15 // pred_check_branch
        %153 = sbr.rel (%p151) target = $region20
      $region19: #{segmap_encoder_forward.1} parent=15 // pred_region
        %p154 = scmp.lt.s32.totalorder %s17, 1
        %s155 = scalar_select %p154, %s17, 1
        %s156 = smul.addr %s155, 24
        %s157 = smul.addr %s156, 8
        %s158 = scalar_lea.vmem %s0, %s157
      $region20: #{segmap_encoder_forward.1} parent=15 // pred_fallthru
        _
      // Predicated region
      $region21: #{segmap_encoder_forward.1} parent=15 // pred_check
        %p159 = pneg %p70
      $region22: #{segmap_encoder_forward.1} parent=15 // pred_check_branch
        %161 = sbr.rel (%p159) target = $region24
      $region23: #{segmap_encoder_forward.1} parent=15 // pred_region
        %s162 = smul.u32 2, %s18
        %p163 = scmp.lt.s32.totalorder %s17, 1
        %s164 = scalar_select %p163, %s17, 1
        %p165 = scmp.lt.s32.totalorder %s162, 1
        %s166 = scalar_select %p165, %s162, 1
        %s167 = smul.addr %s164, 2
        %s168 = sadd.s32 %s166, %s167
        %s169 = smul.addr %s168, 4
        %s170 = scalar_lea.vmem %s1, %s169
        %s171 = smul.u32 2, %s18
      $region24: #{segmap_encoder_forward.1} parent=15 // pred_fallthru
        _
    $region16: #{segmap_encoder_forward.1} parent=5 // pred_fallthru
      _
    %p172 = scmp.le.s32.totalorder 1, %s10
    %p173 = scmp.lt.s32.totalorder %s10, 3
    %p174 = pnand %p172, %p173
    %p175 = pneg %p174
    // Predicated region
    $region25: #{segmap_encoder_forward.1} parent=5 // pred_check
      _
    $region26: #{segmap_encoder_forward.1} parent=5 // pred_check_branch
      %177 = sbr.rel (%p174) target = $region28
    $region27: #{segmap_encoder_forward.1} parent=5 // pred_region
      %s178 = ssub.s32 %s10, 1
      %p179 = scmp.lt.s32.totalorder %s19, 1
      %s180 = scalar_select %p179, %s19, 1
      %s181 = smul.addr %s180, 24
      %s182 = smul.addr %s181, 8
      %s183 = scalar_lea.vmem %s0, %s182
      %p184 = pneg %p48
      %p185 = pneg %p45
      %s186 = smul.u32 2, %s20
      %p187 = scmp.lt.s32.totalorder %s19, 1
      %s188 = scalar_select %p187, %s19, 1
      %p189 = scmp.lt.s32.totalorder %s186, 1
      %s190 = scalar_select %p189, %s186, 1
      %s191 = smul.addr %s188, 2
      %s192 = sadd.s32 %s190, %s191
      %s193 = smul.addr %s192, 4
      %s194 = scalar_lea.vmem %s1, %s193
      %p195 = pneg %p76
      %p196 = pneg %p73
      %p197 = pneg %p104
      %p198 = pneg %p101
      %s199 = smul.u32 2, %s20
      %p200 = scmp.lt.s32.totalorder %s19, 1
      %s201 = scalar_select %p200, %s19, 1
      %p202 = scmp.lt.s32.totalorder %s199, 1
      %s203 = scalar_select %p202, %s199, 1
      %s204 = smul.addr %s201, 8
      %s205 = sadd.s32 %s203, %s204
      %s206 = smul.addr %s205, 8
      %s207 = scalar_lea.vmem %s2, %s206
      %p208 = pneg %p132
      %p209 = pneg %p129
      %s210 = smul.u32 2, %s20
      %p211 = scmp.lt.s32.totalorder %s19, 1
      %s212 = scalar_select %p211, %s19, 1
      %p213 = scmp.lt.s32.totalorder %s210, 1
      %s214 = scalar_select %p213, %s210, 1
      %s215 = smul.addr %s212, 8
      %s216 = sadd.s32 %s214, %s215
      %s217 = smul.addr %s216, 8
      %s218 = scalar_lea.vmem %s3, %s217
      %p219 = scmp.lt.s32.totalorder %s19, 1
      %s220 = scalar_select %p219, %s19, 1
      %s221 = smul.addr %s220, 24
      %s222 = smul.addr %s221, 8
      %s223 = scalar_lea.vmem %s0, %s222
      %s224 = smul.u32 2, %s20
      %p225 = scmp.lt.s32.totalorder %s19, 1
      %s226 = scalar_select %p225, %s19, 1
      %p227 = scmp.lt.s32.totalorder %s224, 1
      %s228 = scalar_select %p227, %s224, 1
      %s229 = smul.addr %s226, 2
      %s230 = sadd.s32 %s228, %s229
      %s231 = smul.addr %s230, 4
      %s232 = scalar_lea.vmem %s1, %s231
      %s233 = smul.u32 2, %s20
      %s234 = smul.u32 2, %s20
      %p235 = scmp.lt.s32.totalorder %s19, 1
      %s236 = scalar_select %p235, %s19, 1
      %p237 = scmp.lt.s32.totalorder %s234, 1
      %s238 = scalar_select %p237, %s234, 1
      %s239 = smul.addr %s236, 8
      %s240 = sadd.s32 %s238, %s239
      %s241 = smul.addr %s240, 8
      %s242 = scalar_lea.vmem %s2, %s241
      %s243 = smul.u32 2, %s20
      %s244 = smul.u32 2, %s20
      %p245 = scmp.lt.s32.totalorder %s19, 1
      %s246 = scalar_select %p245, %s19, 1
      %p247 = scmp.lt.s32.totalorder %s244, 1
      %s248 = scalar_select %p247, %s244, 1
      %s249 = smul.addr %s246, 8
      %s250 = sadd.s32 %s248, %s249
      %s251 = smul.addr %s250, 8
      %s252 = scalar_lea.vmem %s3, %s251
      %s253 = smul.u32 2, %s20
      %v254 = vld [vmem:[%s232] sm:$0xff]
      %v255 = vunpack.c.l.bf16 %v254
      %v256 = vunpack.c.h.bf16 %v254
      %v257 = vld [vmem:[%s223] sm:$0xff]
      %v258 = vld [vmem:[%s223 + $0x8] sm:$0xff]
      %v259 = vld [vmem:[%s223 + $0x10] sm:$0xff]
      %v260 = vld [vmem:[%s223 + $0x18] sm:$0xff]
      %v261 = vld [vmem:[%s223 + $0x20] sm:$0xff]
      %v262 = vld [vmem:[%s223 + $0x28] sm:$0xff]
      %v263 = vld [vmem:[%s223 + $0x30] sm:$0xff]
      %v264 = vld [vmem:[%s223 + $0x38] sm:$0xff]
      %v265 = vld [vmem:[%s223 + $0x40] sm:$0xff]
      %v266 = vld [vmem:[%s223 + $0x48] sm:$0xff]
      %v267 = vld [vmem:[%s223 + $0x50] sm:$0xff]
      %v268 = vld [vmem:[%s223 + $0x58] sm:$0xff]
      %v269 = vld [vmem:[%s223 + $0x60] sm:$0xff]
      %v270 = vld [vmem:[%s223 + $0x68] sm:$0xff]
      %v271 = vld [vmem:[%s223 + $0x70] sm:$0xff]
      %v272 = vld [vmem:[%s223 + $0x78] sm:$0xff]
      %v273 = vld [vmem:[%s223 + $0x80] sm:$0xff]
      %v274 = vld [vmem:[%s223 + $0x88] sm:$0xff]
      %v275 = vld [vmem:[%s223 + $0x90] sm:$0xff]
      %v276 = vld [vmem:[%s223 + $0x98] sm:$0xff]
      %v277 = vld [vmem:[%s223 + $0xa0] sm:$0xff]
      %v278 = vld [vmem:[%s223 + $0xa8] sm:$0xff]
      %v279 = vld [vmem:[%s223 + $0xb0] sm:$0xff]
      %v280 = vld [vmem:[%s223 + $0xb8] sm:$0xff]
      %vm281 = vcmask 64512
      %v283 = vsel %vm281, %v257, 0
      %v286 = vsel %vm281, %v258, 0
      %v289 = vsel %vm281, %v259, 0
      %v292 = vsel %vm281, %v260, 0
      %v295 = vsel %vm281, %v261, 0
      %v298 = vsel %vm281, %v262, 0
      %v301 = vsel %vm281, %v263, 0
      %v304 = vsel %vm281, %v264, 0
      %v307 = vsel %vm281, %v265, 0
      %v310 = vsel %vm281, %v266, 0
      %v313 = vsel %vm281, %v267, 0
      %v316 = vsel %vm281, %v268, 0
      %v319 = vsel %vm281, %v269, 0
      %v322 = vsel %vm281, %v270, 0
      %v325 = vsel %vm281, %v271, 0
      %v328 = vsel %vm281, %v272, 0
      %v331 = vsel %vm281, %v273, 0
      %v334 = vsel %vm281, %v274, 0
      %v337 = vsel %vm281, %v275, 0
      %v340 = vsel %vm281, %v276, 0
      %v343 = vsel %vm281, %v277, 0
      %v346 = vsel %vm281, %v278, 0
      %v349 = vsel %vm281, %v279, 0
      %v352 = vsel %vm281, %v280, 0
      %354 = vmatprep.subr.mxu0 %v256
      %355 = vmatpush1.msra.mxu0 %v255
      %356 = vmatprep.subr.mxu0 0.0
      %357 = vmatpush1.msra.mxu0 0.0
      %358 = vmatprep.subr.mxu0 0.0
      %359 = vmatpush1.msra.mxu0 0.0
      %360 = vmatprep.subr.mxu0 0.0
      %361 = vmatpush1.msra.mxu0 0.0
      %362 = vmatprep.subr.mxu0 0.0
      %363 = vmatpush1.msra.mxu0 0.0
      %364 = vmatprep.subr.mxu0 0.0
      %365 = vmatpush1.msra.mxu0 0.0
      %366 = vmatprep.subr.mxu0 0.0
      %367 = vmatpush1.msra.mxu0 0.0
      %368 = vmatprep.subr.mxu0 0.0
      %369 = vmatpush1.msra.mxu0 0.0
      %370 = vmatprep.subr.mxu0 0.0
      %371 = vmatpush1.msra.mxu0 0.0
      %372 = vmatprep.subr.mxu0 0.0
      %373 = vmatpush1.msra.mxu0 0.0
      %374 = vmatprep.subr.mxu0 0.0
      %375 = vmatpush1.msra.mxu0 0.0
      %376 = vmatprep.subr.mxu0 0.0
      %377 = vmatpush1.msra.mxu0 0.0
      %378 = vmatprep.subr.mxu0 0.0
      %379 = vmatpush1.msra.mxu0 0.0
      %380 = vmatprep.subr.mxu0 0.0
      %381 = vmatpush1.msra.mxu0 0.0
      %382 = vmatprep.subr.mxu0 0.0
      %383 = vmatpush1.msra.mxu0 0.0
      %384 = vmatprep.subr.mxu0 0.0
      %385 = vmatpush1.msra.mxu0 0.0
      %386 = vmatprep.subr.mxu0 0.0
      %387 = vmatpush1.msra.mxu0 0.0
      %388 = vmatprep.subr.mxu0 0.0
      %389 = vmatpush1.msra.mxu0 0.0
      %390 = vmatprep.subr.mxu0 0.0
      %391 = vmatpush1.msra.mxu0 0.0
      %392 = vmatprep.subr.mxu0 0.0
      %393 = vmatpush1.msra.mxu0 0.0
      %394 = vmatprep.subr.mxu0 0.0
      %395 = vmatpush1.msra.mxu0 0.0
      %396 = vmatprep.subr.mxu0 0.0
      %397 = vmatpush1.msra.mxu0 0.0
      %398 = vmatprep.subr.mxu0 0.0
      %399 = vmatpush1.msra.mxu0 0.0
      %400 = vmatprep.subr.mxu0 0.0
      %401 = vmatpush1.msra.mxu0 0.0
      %402 = vmatprep.subr.mxu0 0.0
      %403 = vmatpush1.msra.mxu0 0.0
      %404 = vmatprep.subr.mxu0 0.0
      %405 = vmatpush1.msra.mxu0 0.0
      %406 = vmatprep.subr.mxu0 0.0
      %407 = vmatpush1.msra.mxu0 0.0
      %408 = vmatprep.subr.mxu0 0.0
      %409 = vmatpush1.msra.mxu0 0.0
      %410 = vmatprep.subr.mxu0 0.0
      %411 = vmatpush1.msra.mxu0 0.0
      %412 = vmatprep.subr.mxu0 0.0
      %413 = vmatpush1.msra.mxu0 0.0
      %414 = vmatprep.subr.mxu0 0.0
      %415 = vmatpush1.msra.mxu0 0.0
      %416 = vmatprep.subr.mxu0 0.0
      %417 = vmatpush1.msra.mxu0 0.0
      %418 = vmatprep.mubr.f32.mxu0 0.0
      %419 = vmatmul.mubr.f32.gmra.mrb[0].mxu0 %v283
      %v420 = vpop.f32.mrb[0].mxu0
      %v421 = vadd.f32 0.0, %v420
      %v422 = vpop.f32.mrb[0].mxu0
      %v423 = vadd.f32 0.0, %v422
      %424 = vmatprep.mubr.f32.mxu0 0.0
      %425 = vmatmul.mubr.f32.gmra.mrb[0].mxu0 %v286
      %v426 = vpop.f32.mrb[0].mxu0
      %v427 = vadd.f32 0.0, %v426
      %v428 = vpop.f32.mrb[0].mxu0
      %v429 = vadd.f32 0.0, %v428
      %430 = vmatprep.mubr.f32.mxu0 0.0
      %431 = vmatmul.mubr.f32.gmra.mrb[0].mxu0 %v289
      %v432 = vpop.f32.mrb[0].mxu0
      %v433 = vadd.f32 0.0, %v432
      %v434 = vpop.f32.mrb[0].mxu0
      %v435 = vadd.f32 0.0, %v434
      %436 = vmatprep.mubr.f32.mxu0 0.0
      %437 = vmatmul.mubr.f32.gmra.mrb[0].mxu0 %v292
      %v438 = vpop.f32.mrb[0].mxu0
      %v439 = vadd.f32 0.0, %v438
      %v440 = vpop.f32.mrb[0].mxu0
      %v441 = vadd.f32 0.0, %v440
      %442 = vmatprep.mubr.f32.mxu0 0.0
      %443 = vmatmul.mubr.f32.gmra.mrb[0].mxu0 %v295
      %v444 = vpop.f32.mrb[0].mxu0
      %v445 = vadd.f32 0.0, %v444
      %v446 = vpop.f32.mrb[0].mxu0
      %v447 = vadd.f32 0.0, %v446
      %448 = vmatprep.mubr.f32.mxu0 0.0
      %449 = vmatmul.mubr.f32.gmra.mrb[0].mxu0 %v298
      %v450 = vpop.f32.mrb[0].mxu0
      %v451 = vadd.f32 0.0, %v450
      %v452 = vpop.f32.mrb[0].mxu0
      %v453 = vadd.f32 0.0, %v452
      %454 = vmatprep.mubr.f32.mxu0 0.0
      %455 = vmatmul.mubr.f32.gmra.mrb[0].mxu0 %v301
      %v456 = vpop.f32.mrb[0].mxu0
      %v457 = vadd.f32 0.0, %v456
      %v458 = vpop.f32.mrb[0].mxu0
      %v459 = vadd.f32 0.0, %v458
      %460 = vmatprep.mubr.f32.mxu0 0.0
      %461 = vmatmul.mubr.f32.gmra.mrb[0].mxu0 %v304
      %v462 = vpop.f32.mrb[0].mxu0
      %v463 = vadd.f32 0.0, %v462
      %v464 = vpop.f32.mrb[0].mxu0
      %v465 = vadd.f32 0.0, %v464
      %466 = vmatprep.mubr.f32.mxu0 0.0
      %467 = vmatmul.mubr.f32.gmra.mrb[0].mxu0 %v307
      %v468 = vpop.f32.mrb[0].mxu0
      %v469 = vadd.f32 0.0, %v468
      %v470 = vpop.f32.mrb[0].mxu0
      %v471 = vadd.f32 0.0, %v470
      %472 = vmatprep.mubr.f32.mxu0 0.0
      %473 = vmatmul.mubr.f32.gmra.mrb[0].mxu0 %v310
      %v474 = vpop.f32.mrb[0].mxu0
      %v475 = vadd.f32 0.0, %v474
      %v476 = vpop.f32.mrb[0].mxu0
      %v477 = vadd.f32 0.0, %v476
      %478 = vmatprep.mubr.f32.mxu0 0.0
      %479 = vmatmul.mubr.f32.gmra.mrb[0].mxu0 %v313
      %v480 = vpop.f32.mrb[0].mxu0
      %v481 = vadd.f32 0.0, %v480
      %v482 = vpop.f32.mrb[0].mxu0
      %v483 = vadd.f32 0.0, %v482
      %484 = vmatprep.mubr.f32.mxu0 0.0
      %485 = vmatmul.mubr.f32.gmra.mrb[0].mxu0 %v316
      %v486 = vpop.f32.mrb[0].mxu0
      %v487 = vadd.f32 0.0, %v486
      %v488 = vpop.f32.mrb[0].mxu0
      %v489 = vadd.f32 0.0, %v488
      %490 = vmatprep.mubr.f32.mxu0 0.0
      %491 = vmatmul.mubr.f32.gmra.mrb[0].mxu0 %v319
      %v492 = vpop.f32.mrb[0].mxu0
      %v493 = vadd.f32 0.0, %v492
      %v494 = vpop.f32.mrb[0].mxu0
      %v495 = vadd.f32 0.0, %v494
      %496 = vmatprep.mubr.f32.mxu0 0.0
      %497 = vmatmul.mubr.f32.gmra.mrb[0].mxu0 %v322
      %v498 = vpop.f32.mrb[0].mxu0
      %v499 = vadd.f32 0.0, %v498
      %v500 = vpop.f32.mrb[0].mxu0
      %v501 = vadd.f32 0.0, %v500
      %502 = vmatprep.mubr.f32.mxu0 0.0
      %503 = vmatmul.mubr.f32.gmra.mrb[0].mxu0 %v325
      %v504 = vpop.f32.mrb[0].mxu0
      %v505 = vadd.f32 0.0, %v504
      %v506 = vpop.f32.mrb[0].mxu0
      %v507 = vadd.f32 0.0, %v506
      %508 = vmatprep.mubr.f32.mxu0 0.0
      %509 = vmatmul.mubr.f32.gmra.mrb[0].mxu0 %v328
      %v510 = vpop.f32.mrb[0].mxu0
      %v511 = vadd.f32 0.0, %v510
      %v512 = vpop.f32.mrb[0].mxu0
      %v513 = vadd.f32 0.0, %v512
      %514 = vmatprep.mubr.f32.mxu0 0.0
      %515 = vmatmul.mubr.f32.gmra.mrb[0].mxu0 %v331
      %v516 = vpop.f32.mrb[0].mxu0
      %v517 = vadd.f32 0.0, %v516
      %v518 = vpop.f32.mrb[0].mxu0
      %v519 = vadd.f32 0.0, %v518
      %520 = vmatprep.mubr.f32.mxu0 0.0
      %521 = vmatmul.mubr.f32.gmra.mrb[0].mxu0 %v334
      %v522 = vpop.f32.mrb[0].mxu0
      %v523 = vadd.f32 0.0, %v522
      %v524 = vpop.f32.mrb[0].mxu0
      %v525 = vadd.f32 0.0, %v524
      %526 = vmatprep.mubr.f32.mxu0 0.0
      %527 = vmatmul.mubr.f32.gmra.mrb[0].mxu0 %v337
      %v528 = vpop.f32.mrb[0].mxu0
      %v529 = vadd.f32 0.0, %v528
      %v530 = vpop.f32.mrb[0].mxu0
      %v531 = vadd.f32 0.0, %v530
      %532 = vmatprep.mubr.f32.mxu0 0.0
      %533 = vmatmul.mubr.f32.gmra.mrb[0].mxu0 %v340
      %v534 = vpop.f32.mrb[0].mxu0
      %v535 = vadd.f32 0.0, %v534
      %v536 = vpop.f32.mrb[0].mxu0
      %v537 = vadd.f32 0.0, %v536
      %538 = vmatprep.mubr.f32.mxu0 0.0
      %539 = vmatmul.mubr.f32.gmra.mrb[0].mxu0 %v343
      %v540 = vpop.f32.mrb[0].mxu0
      %v541 = vadd.f32 0.0, %v540
      %v542 = vpop.f32.mrb[0].mxu0
      %v543 = vadd.f32 0.0, %v542
      %544 = vmatprep.mubr.f32.mxu0 0.0
      %545 = vmatmul.mubr.f32.gmra.mrb[0].mxu0 %v346
      %v546 = vpop.f32.mrb[0].mxu0
      %v547 = vadd.f32 0.0, %v546
      %v548 = vpop.f32.mrb[0].mxu0
      %v549 = vadd.f32 0.0, %v548
      %550 = vmatprep.mubr.f32.mxu0 0.0
      %551 = vmatmul.mubr.f32.gmra.mrb[0].mxu0 %v349
      %v552 = vpop.f32.mrb[0].mxu0
      %v553 = vadd.f32 0.0, %v552
      %v554 = vpop.f32.mrb[0].mxu0
      %v555 = vadd.f32 0.0, %v554
      %556 = vmatprep.mubr.f32.mxu0 0.0
      %557 = vmatmul.mubr.f32.gmra.mrb[0].mxu0 %v352
      %v558 = vpop.f32.mrb[0].mxu0
      %v559 = vadd.f32 0.0, %v558
      %v560 = vpop.f32.mrb[0].mxu0
      %v561 = vadd.f32 0.0, %v560
      %562 = vdwg.mxu0
      %v563 = vmul.f32 %v421, %v469
      %v564 = vmul.f32 %v423, %v471
      %v565 = vmul.f32 %v427, %v475
      %v566 = vmul.f32 %v429, %v477
      %v567 = vmul.f32 %v433, %v481
      %v568 = vmul.f32 %v435, %v483
      %v569 = vmul.f32 %v439, %v487
      %v570 = vmul.f32 %v441, %v489
      %v571 = vadd.f32 %v563, %v445
      %v572 = vadd.f32 %v564, %v447
      %v573 = vadd.f32 %v565, %v451
      %v574 = vadd.f32 %v566, %v453
      %v575 = vadd.f32 %v567, %v457
      %v576 = vadd.f32 %v568, %v459
      %v577 = vadd.f32 %v569, %v463
      %v578 = vadd.f32 %v570, %v465
      %579 = vst [vmem:[%s242] sm:$0xff] %v571
      %580 = vst [vmem:[%s242 + $0x8] sm:$0xff] %v572
      %581 = vst [vmem:[%s242 + $0x10] sm:$0xff] %v573
      %582 = vst [vmem:[%s242 + $0x18] sm:$0xff] %v574
      %583 = vst [vmem:[%s242 + $0x20] sm:$0xff] %v575
      %584 = vst [vmem:[%s242 + $0x28] sm:$0xff] %v576
      %585 = vst [vmem:[%s242 + $0x30] sm:$0xff] %v577
      %586 = vst [vmem:[%s242 + $0x38] sm:$0xff] %v578
      %v587 = vmul.f32 %v493, %v541
      %v588 = vmul.f32 %v495, %v543
      %v589 = vmul.f32 %v499, %v547
      %v590 = vmul.f32 %v501, %v549
      %v591 = vmul.f32 %v505, %v553
      %v592 = vmul.f32 %v507, %v555
      %v593 = vmul.f32 %v511, %v559
      %v594 = vmul.f32 %v513, %v561
      %v595 = vadd.f32 %v587, %v517
      %v596 = vadd.f32 %v588, %v519
      %v597 = vadd.f32 %v589, %v523
      %v598 = vadd.f32 %v590, %v525
      %v599 = vadd.f32 %v591, %v529
      %v600 = vadd.f32 %v592, %v531
      %v601 = vadd.f32 %v593, %v535
      %v602 = vadd.f32 %v594, %v537
      %603 = vst [vmem:[%s252] sm:$0xff] %v595
      %604 = vst [vmem:[%s252 + $0x8] sm:$0xff] %v596
      %605 = vst [vmem:[%s252 + $0x10] sm:$0xff] %v597
      %606 = vst [vmem:[%s252 + $0x18] sm:$0xff] %v598
      %607 = vst [vmem:[%s252 + $0x20] sm:$0xff] %v599
      %608 = vst [vmem:[%s252 + $0x28] sm:$0xff] %v600
      %609 = vst [vmem:[%s252 + $0x30] sm:$0xff] %v601
      %610 = vst [vmem:[%s252 + $0x38] sm:$0xff] %v602
      %s611 = smul.u32 2, %s20
      %p612 = scmp.lt.s32.totalorder %s19, 1
      %s613 = scalar_select %p612, %s19, 1
      %p614 = scmp.lt.s32.totalorder %s611, 1
      %s615 = scalar_select %p614, %s611, 1
      %s616 = smul.addr %s613, 8
      %s617 = sadd.s32 %s615, %s616
      %s618 = smul.addr %s617, 8
      %s619 = scalar_lea.vmem %s2, %s618
      %s620 = smul.u32 2, %s20
      %p621 = scmp.lt.s32.totalorder %s19, 1
      %s622 = scalar_select %p621, %s19, 1
      %p623 = scmp.lt.s32.totalorder %s620, 1
      %s624 = scalar_select %p623, %s620, 1
      %s625 = smul.addr %s622, 8
      %s626 = sadd.s32 %s624, %s625
      %s627 = smul.addr %s626, 8
      %s628 = scalar_lea.vmem %s3, %s627
      // Predicated region
      $region29: #{segmap_encoder_forward.1} parent=27 // pred_check
        %p629 = pneg %p101
      $region30: #{segmap_encoder_forward.1} parent=27 // pred_check_branch
        %631 = sbr.rel (%p629) target = $region32
      $region31: #{segmap_encoder_forward.1} parent=27 // pred_region
        %s632 = smul.u32 2, %s20
      $region32: #{segmap_encoder_forward.1} parent=27 // pred_fallthru
        _
      // Predicated region
      $region33: #{segmap_encoder_forward.1} parent=27 // pred_check
        %p633 = pneg %p129
      $region34: #{segmap_encoder_forward.1} parent=27 // pred_check_branch
        %635 = sbr.rel (%p633) target = $region36
      $region35: #{segmap_encoder_forward.1} parent=27 // pred_region
        %s636 = smul.u32 2, %s20
      $region36: #{segmap_encoder_forward.1} parent=27 // pred_fallthru
        _
    $region28: #{segmap_encoder_forward.1} parent=5 // pred_fallthru
      _
    %p637 = scmp.le.s32.totalorder 2, %s10
    // Predicated region
    $region37: #{segmap_encoder_forward.1} parent=5 // pred_check
      %p638 = pneg %p637
    $region38: #{segmap_encoder_forward.1} parent=5 // pred_check_branch
      %640 = sbr.rel (%p638) target = $region40
    $region39: #{segmap_encoder_forward.1} parent=5 // pred_region
      %s641 = ssub.s32 %s10, 2
      // Predicated region
      $region41: #{segmap_encoder_forward.1} parent=39 // pred_check
        %p642 = pneg %p107
      $region42: #{segmap_encoder_forward.1} parent=39 // pred_check_branch
        %644 = sbr.rel (%p642) target = $region44
      $region43: #{segmap_encoder_forward.1} parent=39 // pred_region
        %s645 = smul.u32 2, %s22
        %p646 = scmp.lt.s32.totalorder %s21, 1
        %s647 = scalar_select %p646, %s21, 1
        %p648 = scmp.lt.s32.totalorder %s645, 1
        %s649 = scalar_select %p648, %s645, 1
        %s650 = smul.addr %s647, 8
        %s651 = sadd.s32 %s649, %s650
        %s652 = smul.addr %s651, 8
        %s653 = scalar_lea.vmem %s2, %s652
      $region44: #{segmap_encoder_forward.1} parent=39 // pred_fallthru
        _
      // Predicated region
      $region45: #{segmap_encoder_forward.1} parent=39 // pred_check
        %p654 = pneg %p135
      $region46: #{segmap_encoder_forward.1} parent=39 // pred_check_branch
        %656 = sbr.rel (%p654) target = $region48
      $region47: #{segmap_encoder_forward.1} parent=39 // pred_region
        %s657 = smul.u32 2, %s22
        %p658 = scmp.lt.s32.totalorder %s21, 1
        %s659 = scalar_select %p658, %s21, 1
        %p660 = scmp.lt.s32.totalorder %s657, 1
        %s661 = scalar_select %p660, %s657, 1
        %s662 = smul.addr %s659, 8
        %s663 = sadd.s32 %s661, %s662
        %s664 = smul.addr %s663, 8
        %s665 = scalar_lea.vmem %s3, %s664
      $region48: #{segmap_encoder_forward.1} parent=39 // pred_fallthru
        _
    $region40: #{segmap_encoder_forward.1} parent=5 // pred_fallthru
      _
  $region6: #{segmap_encoder_forward.1} parent=0 // loop_footer
    %s14 = sadd.s32 1, %s10
  $region7: #{segmap_encoder_forward.1} parent=0 // loop_footer_branch
    %9 = sbr.rel target = $region3
  $region8: #{segmap_encoder_forward.1} parent=0 // loop_exit
    _

</llo_original>
